<compile_context>
chip_gen: v5e
topology: v5e:2x2
jax: 0.10.0
libtpu: 0.0.40
codegen_flags: <defaults>
</compile_context>

<pallas_src>
import functools

import jax
import jax.numpy as jnp
from jax.experimental import pallas as pl
from jax.experimental.pallas import tpu as pltpu

GN_EPS = 1e-5  # torch.nn.GroupNorm default


# ---------------------------------------------------------------------------
# Small helpers
# ---------------------------------------------------------------------------
def _vmem_tile_bytes(shape, dtype):
    """Bytes of a block once padded to the native (sublane, lane) VMEM tile."""
    isz = jnp.dtype(dtype).itemsize
    native_sub = max(8, 32 // isz)  # f32: 8, bf16: 16, int8/fp8: 32
    lane = shape[-1]
    sub = shape[-2] if len(shape) >= 2 else 1
    lead = 1
    for d in shape[:-2]:
        lead *= int(d)
    lane_p = -(-int(lane) // 128) * 128
    sub_p = -(-int(sub) // native_sub) * native_sub
    return lead * sub_p * lane_p * isz


def _vmem_capacity_bytes():
    try:
        cap = int(getattr(pltpu.get_tpu_info(), "vmem_capacity_bytes", 0))
        if cap > 0:
            return cap
    except Exception:
        pass
    return 64 << 20  # conservative default (v7x per-TensorCore VMEM)


def _pack_params(params, cpg):
    """Fold (cweight,cbias,sweight,sbias,gn_weight,gn_bias) into per-row (alpha,beta,gamma).

    Row r < cpg  (channel-attention half): gate = sigmoid(beta*mu + gamma)        -> alpha=0
    Row r >= cpg (GroupNorm half):         gate = sigmoid(alpha*(x-mu)/std+gamma) -> beta=0
    """
    cw = params["cweight"].reshape(cpg).astype(jnp.float32)
    cb = params["cbias"].reshape(cpg).astype(jnp.float32)
    sw = params["sweight"].reshape(cpg).astype(jnp.float32)
    sb = params["sbias"].reshape(cpg).astype(jnp.float32)
    gw = params["gn_weight"].reshape(cpg).astype(jnp.float32)
    gb = params["gn_bias"].reshape(cpg).astype(jnp.float32)
    zeros = jnp.zeros((cpg,), jnp.float32)
    alpha = jnp.concatenate([zeros, sw * gw])  # (2*cpg,)
    beta = jnp.concatenate([cw, zeros])
    gamma = jnp.concatenate([cb, sw * gb + sb])
    return jnp.stack([alpha, beta, gamma], axis=-1)  # (2*cpg, 3)


# ---------------------------------------------------------------------------
# Kernels
# ---------------------------------------------------------------------------
def _resident_kernel(p_ref, x_ref, o_ref, *, inv_hw, n_pad):
    # p_ref: (2*cpg, 3) params; x_ref: (TB, 2, 2*cpg, HWp); o_ref: (TB, 2*cpg, 2*HWp)
    p = p_ref[...].astype(jnp.float32)
    alpha = p[:, 0:1]
    beta = p[:, 1:2]
    gamma = p[:, 2:3]

    hwp = x_ref.shape[-1]
    x = x_ref[...].astype(jnp.float32)
    mu = jnp.sum(x, axis=-1, keepdims=True) * inv_hw          # exact (pad is zero)
    centred = x - mu
    ss = jnp.sum(centred * centred, axis=-1, keepdims=True)
    # Two-pass variance; subtract the exact contribution of the zero-pad region.
    var = jnp.maximum((ss - n_pad * (mu * mu)) * inv_hw, 0.0)
    gate = jax.nn.sigmoid(alpha * jax.lax.rsqrt(var + GN_EPS) * centred
                          + beta * mu + gamma)
    y = (x * gate).astype(o_ref.dtype)                        # (TB, 2, 2*cpg, HWp)

    # Fused channel_shuffle: [group t | group t+G/2] lane-concatenated; dense stores.
    o_ref[:, :, :hwp] = y[:, 0]
    o_ref[:, :, hwp:] = y[:, 1]


def _stats_kernel(p_ref, x_ref, a_ref, c_ref, *, inv_hw):
    # Pass 1 of the HW-chunked path: accumulate sum / sumsq per channel, then fold the
    # per-channel gate into two scalars: gate = sigmoid(a*x + c).
    ci = pl.program_id(2)
    nc = pl.num_programs(2)

    @pl.when(ci == 0)
    def _():
        a_ref[...] = jnp.zeros_like(a_ref)
        c_ref[...] = jnp.zeros_like(c_ref)

    x = x_ref[...].astype(jnp.float32)                         # (TB, 2, 2*cpg, HWC)
    a_ref[...] += jnp.sum(x, axis=-1, keepdims=True)           # running sum
    c_ref[...] += jnp.sum(x * x, axis=-1, keepdims=True)       # running sumsq

    @pl.when(ci == nc - 1)
    def _():
        p = p_ref[...].astype(jnp.float32)
        alpha = p[:, 0:1]
        beta = p[:, 1:2]
        gamma = p[:, 2:3]
        mu = a_ref[...] * inv_hw                               # (TB, 2, 2*cpg, 1)
        var = jnp.maximum(c_ref[...] * inv_hw - mu * mu, 0.0)  # one-pass (f32 accum)
        a = alpha * jax.lax.rsqrt(var + GN_EPS)
        c_ref[...] = (beta - a) * mu + gamma                   # c coefficient
        a_ref[...] = a                                         # a coefficient


def _apply_kernel(a_ref, c_ref, x_ref, o_ref):
    # Pass 2 of the HW-chunked path: out = x * sigmoid(a*x + c) per channel/chunk.
    a = a_ref[...].astype(jnp.float32)                         # (TB, 2*cpg, 1)
    c = c_ref[...].astype(jnp.float32)
    x = x_ref[...].astype(jnp.float32)                         # (TB, 2*cpg, HWC)
    o_ref[...] = (x * jax.nn.sigmoid(a * x + c)).astype(o_ref.dtype)


# ---------------------------------------------------------------------------
# Wrapper
# ---------------------------------------------------------------------------
def sa_layer_forward(x, params, groups=4, *, force_chunked=False, chunk_lanes=None):
    """x: (B, C, H, W) NCHW (f32 or bf16). Matches sa_layer.forward of the PyTorch module."""
    b, c, h, w = x.shape
    assert c % (2 * groups) == 0, "n_feats must be divisible by 2*groups"
    assert groups % 2 == 0, "fused channel_shuffle path assumes an even group count"
    cpg = c // (2 * groups)
    g2 = groups // 2
    hw = h * w
    hw_pad = -(-hw // 128) * 128
    n_pad = hw_pad - hw
    inv_hw = 1.0 / hw
    dtype = x.dtype
    isz = jnp.dtype(dtype).itemsize

    packed = _pack_params(params, cpg)                         # (2*cpg, 3) f32

    xr = x.reshape(b, c, hw)
    if n_pad:
        xr = jnp.pad(xr, ((0, 0), (0, 0), (0, n_pad)))
    # Free reshape: group index g = s*g2 + t  ->  dims (b, s, t, row, hw_pad).
    xr = xr.reshape(b, 2, g2, 2 * cpg, hw_pad)

    capacity = _vmem_capacity_bytes()
    budget = capacity - (8 << 20)
    out_sds = jax.ShapeDtypeStruct((b, g2, 2 * cpg, 2 * hw_pad), dtype)
    nelem = b * c * hw_pad

    def resident_vmem_needed(tb):
        in_blk = _vmem_tile_bytes((tb, 2, 2 * cpg, hw_pad), dtype)
        out_blk = _vmem_tile_bytes((tb, 2 * cpg, 2 * hw_pad), dtype)
        in_f32 = _vmem_tile_bytes((tb, 2, 2 * cpg, hw_pad), jnp.float32)
        # double-buffered in/out + headroom for elementwise f32 temporaries
        return 2 * (in_blk + out_blk) + 4 * in_f32 + (1 << 20)

    def resident_step_bytes(tb):
        return tb * (2 * 2 * cpg * hw_pad + 2 * cpg * 2 * hw_pad) * isz

    divisors = [d for d in range(1, b + 1) if b % d == 0]
    feasible = [d for d in divisors if resident_vmem_needed(d) <= budget]
    use_resident = bool(feasible) and not force_chunked

    if use_resident:
        # ---- resident path: whole (2*cpg, HW) row in VMEM, single pass ----------
        target = 6 << 20  # ~4-8 MiB of HBM traffic per grid step
        under = [d for d in feasible if resident_step_bytes(d) <= target]
        tb = max(under) if under else min(feasible)
        while tb > 1 and (b // tb) * g2 < 4:   # keep >= 4 steps for v7x megacore
            smaller = [d for d in feasible if d < tb]
            if not smaller:
                break
            tb = max(smaller)

        vmem_limit = int(min(capacity - (2 << 20),
                             max(32 << 20, resident_vmem_needed(tb))))
        cost = pl.CostEstimate(flops=int(12 * nelem), transcendentals=int(nelem),
                               bytes_accessed=int(2 * nelem * isz))

        out = pl.pallas_call(
            functools.partial(_resident_kernel, inv_hw=inv_hw, n_pad=n_pad),
            out_shape=out_sds,
            grid_spec=pltpu.PrefetchScalarGridSpec(
                num_scalar_prefetch=0,
                grid=(b // tb, g2),
                in_specs=[
                    pl.BlockSpec((2 * cpg, 3), lambda bi, t: (0, 0)),
                    pl.BlockSpec((tb, 2, None, 2 * cpg, hw_pad),
                                 lambda bi, t: (bi, 0, t, 0, 0)),
                ],
                out_specs=pl.BlockSpec((tb, None, 2 * cpg, 2 * hw_pad),
                                       lambda bi, t: (bi, t, 0, 0)),
            ),
            compiler_params=pltpu.CompilerParams(
                dimension_semantics=("parallel", "parallel"),
                vmem_limit_bytes=vmem_limit),
            cost_estimate=cost,
        )(packed, xr)
    else:
        # ---- HW-chunked path: stats pass then gate-apply pass -------------------
        if chunk_lanes is None:
            per_lane = 4 * 2 * cpg * max(isz, 4)
            m = hw_pad // 128
            best = 1
            for k in range(1, m + 1):
                if m % k == 0 and 128 * k * per_lane <= (4 << 20):
                    best = k
            hwc = 128 * best
        else:
            hwc = int(chunk_lanes)
            assert hwc % 128 == 0 and hw_pad % hwc == 0
        nc = hw_pad // hwc
        tb = 1  # chunk axis supplies the grid steps for large H*W

        stats_sds = jax.ShapeDtypeStruct((b, 2, g2, 2 * cpg, 1), jnp.float32)
        stats_vmem = (2 * _vmem_tile_bytes((tb, 2, 2 * cpg, hwc), dtype)
                      + 2 * _vmem_tile_bytes((tb, 2, 2 * cpg, hwc), jnp.float32)
                      + (1 << 20))
        vmem_limit1 = int(min(capacity - (2 << 20), max(32 << 20, stats_vmem)))
        stats_cost = pl.CostEstimate(flops=int(3 * nelem), transcendentals=int(b * c),
                                     bytes_accessed=int(nelem * isz))

        a_coef, c_coef = pl.pallas_call(
            functools.partial(_stats_kernel, inv_hw=inv_hw),
            out_shape=(stats_sds, stats_sds),
            grid_spec=pltpu.PrefetchScalarGridSpec(
                num_scalar_prefetch=0,
                grid=(b // tb, g2, nc),
                in_specs=[
                    pl.BlockSpec((2 * cpg, 3), lambda bi, t, ci: (0, 0)),
                    pl.BlockSpec((tb, 2, None, 2 * cpg, hwc),
                                 lambda bi, t, ci: (bi, 0, t, 0, ci)),
                ],
                out_specs=[
                    pl.BlockSpec((tb, 2, None, 2 * cpg, 1),
                                 lambda bi, t, ci: (bi, 0, t, 0, 0)),
                    pl.BlockSpec((tb, 2, None, 2 * cpg, 1),
                                 lambda bi, t, ci: (bi, 0, t, 0, 0)),
                ],
            ),
            compiler_params=pltpu.CompilerParams(
                dimension_semantics=("parallel", "parallel", "arbitrary"),
                vmem_limit_bytes=vmem_limit1),
            cost_estimate=stats_cost,
        )(packed, xr)

        apply_vmem = (4 * _vmem_tile_bytes((tb, 2 * cpg, hwc), dtype)
                      + 2 * _vmem_tile_bytes((tb, 2 * cpg, hwc), jnp.float32)
                      + (1 << 20))
        vmem_limit2 = int(min(capacity - (2 << 20), max(32 << 20, apply_vmem)))
        apply_cost = pl.CostEstimate(flops=int(5 * nelem), transcendentals=int(nelem),
                                     bytes_accessed=int(2 * nelem * isz))

        out = pl.pallas_call(
            _apply_kernel,
            out_shape=out_sds,
            grid_spec=pltpu.PrefetchScalarGridSpec(
                num_scalar_prefetch=0,
                grid=(b // tb, g2, 2, nc),
                in_specs=[
                    pl.BlockSpec((tb, None, None, 2 * cpg, 1),
                                 lambda bi, t, s, ci: (bi, s, t, 0, 0)),
                    pl.BlockSpec((tb, None, None, 2 * cpg, 1),
                                 lambda bi, t, s, ci: (bi, s, t, 0, 0)),
                    pl.BlockSpec((tb, None, None, 2 * cpg, hwc),
                                 lambda bi, t, s, ci: (bi, s, t, 0, ci)),
                ],
                out_specs=pl.BlockSpec((tb, None, 2 * cpg, hwc),
                                       lambda bi, t, s, ci: (bi, t, 0, s * nc + ci)),
            ),
            compiler_params=pltpu.CompilerParams(
                dimension_semantics=("parallel", "parallel", "parallel", "arbitrary"),
                vmem_limit_bytes=vmem_limit2),
            cost_estimate=apply_cost,
        )(a_coef, c_coef, xr)

    # (b, g2, 2*cpg, 2*hw_pad) row-major is exactly channel_shuffle(out, 2); drop the
    # spatial zero-pad (no-op slice when hw is already lane-aligned).
    return out.reshape(b, c, hw_pad)[:, :, :hw].reshape(b, c, h, w)


# ---------------------------------------------------------------------------
# Pure-jnp reference mirroring the PyTorch forward (for the correctness check).
# ---------------------------------------------------------------------------
def _channel_shuffle_ref(x, groups):
    b, c, h, w = x.shape
    x = x.reshape(b, groups, c // groups, h, w)
    x = jnp.transpose(x, (0, 2, 1, 3, 4))
    return x.reshape(b, c, h, w)


def sa_layer_reference(x, params, groups=4):
    b, c, h, w = x.shape
    cpg = c // (2 * groups)
    xr = x.reshape(b * groups, 2 * cpg, h, w)
    x0, x1 = xr[:, :cpg], xr[:, cpg:]

    cw = params["cweight"].reshape(1, cpg, 1, 1)
    cb = params["cbias"].reshape(1, cpg, 1, 1)
    sw = params["sweight"].reshape(1, cpg, 1, 1)
    sb = params["sbias"].reshape(1, cpg, 1, 1)
    gw = params["gn_weight"].reshape(1, cpg, 1, 1)
    gb = params["gn_bias"].reshape(1, cpg, 1, 1)

    xn = jnp.mean(x0, axis=(2, 3), keepdims=True)
    xn = x0 * jax.nn.sigmoid(cw * xn + cb)

    mu = jnp.mean(x1, axis=(2, 3), keepdims=True)
    var = jnp.mean((x1 - mu) ** 2, axis=(2, 3), keepdims=True)
    gn = (x1 - mu) * jax.lax.rsqrt(var + GN_EPS) * gw + gb
    xs = x1 * jax.nn.sigmoid(sw * gn + sb)

    out = jnp.concatenate([xn, xs], axis=1).reshape(b, c, h, w)
    return _channel_shuffle_ref(out, 2)


def init_params(n_feats, groups, key):
    # The module inits cweight/sweight=0, cbias/sbias=1, GN affine=(1,0); use random
    # (deterministic) values so the pooling/GroupNorm paths are actually exercised.
    cpg = n_feats // (2 * groups)
    ks = jax.random.split(key, 6)
    shape = (1, cpg, 1, 1)
    n = lambda k: 0.5 * jax.random.normal(k, shape, jnp.float32)
    return {
        "cweight": n(ks[0]),
        "cbias": 1.0 + n(ks[1]),
        "sweight": n(ks[2]),
        "sbias": 1.0 + n(ks[3]),
        "gn_weight": 1.0 + n(ks[4]),
        "gn_bias": n(ks[5]),
    }


if __name__ == "__main__":
    GROUPS = 4
    B, C, H, W = 2, 32, 16, 16  # n_feats=32, groups=4 -> cpg=4, HW=256

    kx, kp, ku = jax.random.split(jax.random.PRNGKey(0), 3)
    x = jax.random.normal(kx, (B, C, H, W), dtype=jnp.float32)
    params = init_params(C, GROUPS, kp)
    ref = sa_layer_reference(x, params, groups=GROUPS)

    # 1) resident (VMEM-row) path, f32
    out = jax.block_until_ready(sa_layer_forward(x, params, groups=GROUPS))
    assert out.shape == (B, C, H, W)
    assert jnp.allclose(out, ref, atol=1e-4, rtol=1e-4), "resident f32 mismatch"

    # 2) resident path, bf16 HBM I/O (f32 compute in-kernel); compare against the
    #    reference evaluated on the same bf16-quantized input.
    xb = x.astype(jnp.bfloat16)
    out_b = jax.block_until_ready(sa_layer_forward(xb, params, groups=GROUPS))
    ref_b = sa_layer_reference(xb.astype(jnp.float32), params, groups=GROUPS)
    assert out_b.dtype == jnp.bfloat16
    assert jnp.allclose(out_b.astype(jnp.float32), ref_b, atol=2e-2, rtol=2e-2), \
        "bf16 mismatch"

    # 3) HW-chunked two-pass path (forced here; normally chosen automatically when the
    #    whole (2*cpg, HW) row exceeds the per-generation VMEM budget).
    out_c = jax.block_until_ready(
        sa_layer_forward(x, params, groups=GROUPS, force_chunked=True, chunk_lanes=128))
    assert jnp.allclose(out_c, ref, atol=5e-4, rtol=5e-4), "chunked mismatch"

    # 4) lane-unaligned spatial size (H*W % 128 != 0) -> zero-pad + exact variance fix-up.
    x2 = jax.random.normal(ku, (B, C, 12, 12), dtype=jnp.float32)
    out_u = jax.block_until_ready(sa_layer_forward(x2, params, groups=GROUPS))
    ref_u = sa_layer_reference(x2, params, groups=GROUPS)
    assert jnp.allclose(out_u, ref_u, atol=1e-4, rtol=1e-4), "padded (unaligned HW) mismatch"

    print("KERNEL_OK")
</pallas_src>

<mosaic_0001>
module attributes {stable_mosaic.version = 11 : i64} {
  func.func @_resident_kernel(%arg0: i32, %arg1: i32, %arg2: memref<8x3xf32, #tpu.memory_space<vmem>>, %arg3: memref<1x2x1x8x256xf32, #tpu.memory_space<vmem>>, %arg4: memref<1x1x8x512xf32, #tpu.memory_space<vmem>>) attributes {dimension_semantics = [#tpu.dimension_semantics<parallel>, #tpu.dimension_semantics<parallel>], iteration_bounds = array<i64: 2, 2>, scalar_prefetch = 0 : i64, scratch_operands = 0 : i64, tpu.core_type = #tpu.core_type<tc>, window_params = [{pipeline_mode = #tpu.pipeline_mode<synchronous>, transform_indices = @transform_0, window_bounds = array<i64: 8, 3>}, {transform_indices = @transform_1, window_bounds = array<i64: 1, 2, 1, 8, 256>}, {transform_indices = @transform_2, window_bounds = array<i64: 1, 1, 8, 512>}]} {
    %c0 = arith.constant 0 : index
    %c0_0 = arith.constant 0 : index
    %0 = vector.load %arg2[%c0, %c0_0] : memref<8x3xf32, #tpu.memory_space<vmem>>, vector<8x3xf32>
    %1 = vector.extract_strided_slice %0 {offsets = [0, 0], sizes = [8, 1], strides = [1, 1]} : vector<8x3xf32> to vector<8x1xf32>
    %2 = vector.extract_strided_slice %0 {offsets = [0, 1], sizes = [8, 1], strides = [1, 1]} : vector<8x3xf32> to vector<8x1xf32>
    %3 = vector.extract_strided_slice %0 {offsets = [0, 2], sizes = [8, 1], strides = [1, 1]} : vector<8x3xf32> to vector<8x1xf32>
    %c0_1 = arith.constant 0 : index
    %c0_2 = arith.constant 0 : index
    %c0_3 = arith.constant 0 : index
    %c0_4 = arith.constant 0 : index
    %c0_5 = arith.constant 0 : index
    %4 = vector.load %arg3[%c0_1, %c0_2, %c0_3, %c0_4, %c0_5] : memref<1x2x1x8x256xf32, #tpu.memory_space<vmem>>, vector<1x2x1x8x256xf32>
    %5 = vector.shape_cast %4 : vector<1x2x1x8x256xf32> to vector<1x2x8x256xf32>
    %cst = arith.constant dense<0.000000e+00> : vector<1x2x8xf32>
    %6 = vector.multi_reduction <add>, %5, %cst [3] : vector<1x2x8x256xf32> to vector<1x2x8xf32>
    %7 = vector.shape_cast %6 : vector<1x2x8xf32> to vector<1x2x8x1xf32>
    %cst_6 = arith.constant 3.906250e-03 : f32
    %8 = vector.broadcast %cst_6 : f32 to vector<1x2x8x1xf32>
    %9 = arith.mulf %7, %8 : vector<1x2x8x1xf32>
    %10 = vector.broadcast %9 : vector<1x2x8x1xf32> to vector<1x2x8x256xf32>
    %11 = arith.subf %5, %10 : vector<1x2x8x256xf32>
    %12 = arith.mulf %11, %11 : vector<1x2x8x256xf32>
    %cst_7 = arith.constant dense<0.000000e+00> : vector<1x2x8xf32>
    %13 = vector.multi_reduction <add>, %12, %cst_7 [3] : vector<1x2x8x256xf32> to vector<1x2x8xf32>
    %14 = vector.shape_cast %13 : vector<1x2x8xf32> to vector<1x2x8x1xf32>
    %15 = arith.mulf %9, %9 : vector<1x2x8x1xf32>
    %cst_8 = arith.constant 0.000000e+00 : f32
    %16 = vector.broadcast %cst_8 : f32 to vector<1x2x8x1xf32>
    %17 = arith.mulf %16, %15 : vector<1x2x8x1xf32>
    %18 = arith.subf %14, %17 : vector<1x2x8x1xf32>
    %cst_9 = arith.constant 3.906250e-03 : f32
    %19 = vector.broadcast %cst_9 : f32 to vector<1x2x8x1xf32>
    %20 = arith.mulf %18, %19 : vector<1x2x8x1xf32>
    %cst_10 = arith.constant 0.000000e+00 : f32
    %21 = vector.broadcast %cst_10 : f32 to vector<1x2x8x1xf32>
    %22 = arith.maximumf %20, %21 : vector<1x2x8x1xf32>
    %cst_11 = arith.constant 9.99999974E-6 : f32
    %23 = vector.broadcast %cst_11 : f32 to vector<1x2x8x1xf32>
    %24 = arith.addf %22, %23 : vector<1x2x8x1xf32>
    %25 = math.rsqrt %24 : vector<1x2x8x1xf32>
    %26 = vector.shape_cast %1 : vector<8x1xf32> to vector<1x1x8x1xf32>
    %27 = vector.broadcast %26 : vector<1x1x8x1xf32> to vector<1x2x8x1xf32>
    %28 = arith.mulf %27, %25 : vector<1x2x8x1xf32>
    %29 = vector.broadcast %28 : vector<1x2x8x1xf32> to vector<1x2x8x256xf32>
    %30 = arith.mulf %29, %11 : vector<1x2x8x256xf32>
    %31 = vector.shape_cast %2 : vector<8x1xf32> to vector<1x1x8x1xf32>
    %32 = vector.broadcast %31 : vector<1x1x8x1xf32> to vector<1x2x8x1xf32>
    %33 = arith.mulf %32, %9 : vector<1x2x8x1xf32>
    %34 = vector.broadcast %33 : vector<1x2x8x1xf32> to vector<1x2x8x256xf32>
    %35 = arith.addf %30, %34 : vector<1x2x8x256xf32>
    %36 = vector.shape_cast %3 : vector<8x1xf32> to vector<1x1x8x1xf32>
    %37 = vector.broadcast %36 : vector<1x1x8x1xf32> to vector<1x2x8x256xf32>
    %38 = arith.addf %35, %37 : vector<1x2x8x256xf32>
    %39 = arith.negf %38 : vector<1x2x8x256xf32>
    %40 = math.exp %39 : vector<1x2x8x256xf32>
    %cst_12 = arith.constant 1.000000e+00 : f32
    %41 = vector.broadcast %cst_12 : f32 to vector<1x2x8x256xf32>
    %42 = arith.addf %41, %40 : vector<1x2x8x256xf32>
    %43 = arith.divf %41, %42 : vector<1x2x8x256xf32>
    %44 = arith.mulf %5, %43 : vector<1x2x8x256xf32>
    %45 = vector.extract_strided_slice %44 {offsets = [0, 0, 0, 0], sizes = [1, 1, 8, 256], strides = [1, 1, 1, 1]} : vector<1x2x8x256xf32> to vector<1x1x8x256xf32>
    %46 = vector.shape_cast %45 : vector<1x1x8x256xf32> to vector<1x8x256xf32>
    %c0_13 = arith.constant 0 : index
    %c0_14 = arith.constant 0 : index
    %c0_15 = arith.constant 0 : index
    %c0_16 = arith.constant 0 : index
    %47 = vector.load %arg4[%c0_13, %c0_14, %c0_15, %c0_16] : memref<1x1x8x512xf32, #tpu.memory_space<vmem>>, vector<1x1x8x256xf32>
    %48 = vector.shape_cast %47 : vector<1x1x8x256xf32> to vector<1x8x256xf32>
    %49 = vector.shape_cast %46 : vector<1x8x256xf32> to vector<1x1x8x256xf32>
    tpu.vector_store %arg4[%c0_13, %c0_14, %c0_15, %c0_16], %49 {strides = array<i32>} : memref<1x1x8x512xf32, #tpu.memory_space<vmem>>, vector<1x1x8x256xf32>,
    %50 = vector.extract_strided_slice %44 {offsets = [0, 1, 0, 0], sizes = [1, 1, 8, 256], strides = [1, 1, 1, 1]} : vector<1x2x8x256xf32> to vector<1x1x8x256xf32>
    %51 = vector.shape_cast %50 : vector<1x1x8x256xf32> to vector<1x8x256xf32>
    %c0_17 = arith.constant 0 : index
    %c0_18 = arith.constant 0 : index
    %c0_19 = arith.constant 0 : index
    %c256 = arith.constant 256 : index
    %52 = vector.load %arg4[%c0_17, %c0_18, %c0_19, %c256] : memref<1x1x8x512xf32, #tpu.memory_space<vmem>>, vector<1x1x8x256xf32>
    %53 = vector.shape_cast %52 : vector<1x1x8x256xf32> to vector<1x8x256xf32>
    %54 = vector.shape_cast %51 : vector<1x8x256xf32> to vector<1x1x8x256xf32>
    tpu.vector_store %arg4[%c0_17, %c0_18, %c0_19, %c256], %54 {strides = array<i32>} : memref<1x1x8x512xf32, #tpu.memory_space<vmem>>, vector<1x1x8x256xf32>,
    return
  }
  func.func @transform_0(%arg0: i32, %arg1: i32) -> (i32, i32) {
    %c0_i32 = arith.constant 0 : i32
    %c0_i32_0 = arith.constant 0 : i32
    %c0_i32_1 = arith.constant 0 : i32
    return %c0_i32, %c0_i32_0 : i32, i32
  }
  func.func @transform_1(%arg0: i32, %arg1: i32) -> (i32, i32, i32, i32, i32) {
    %c0_i32 = arith.constant 0 : i32
    %c0_i32_0 = arith.constant 0 : i32
    %c0_i32_1 = arith.constant 0 : i32
    %c0_i32_2 = arith.constant 0 : i32
    return %arg0, %c0_i32, %arg1, %c0_i32_0, %c0_i32_1 : i32, i32, i32, i32, i32
  }
  func.func @transform_2(%arg0: i32, %arg1: i32) -> (i32, i32, i32, i32) {
    %c0_i32 = arith.constant 0 : i32
    %c0_i32_0 = arith.constant 0 : i32
    %c0_i32_1 = arith.constant 0 : i32
    return %arg0, %arg1, %c0_i32, %c0_i32_0 : i32, i32, i32, i32
  }
}

</mosaic_0001>

<llo_original>
// kernel: tpu_custom_call.1
$region0: #{tpu_custom_call.1}
  #allocation0 [shape = 'u32[]', space=smem, size = 0x4, offset = 0x4, fixed_abs, tag = 'smem constant byte address 0x4 - core index']
  #allocation1 [shape = 'u32[72,128]{1,0:T(1,128)}', space=vmem, size = 0x9000, scoped, tag = 'internal scratch']
  %s0 = inlined_call_operand.vmem [shape: f32[8,3], index: 0, kind: input, shape index: {}]
  %s1 = inlined_call_operand.hbm [shape: f32[2,2,2,8,256], index: 1, kind: input, shape index: {}]
  %s2 = inlined_call_operand.hbm [shape: f32[2,2,8,512], index: 2, kind: output, shape index: {}]
  %s3 = sld [smem:[#allocation0]]
  $region45: #{tpu_custom_call.1} parent=0
    _
  %s5 = ssub.s32 1, %s3
  %s6 = scalar_select 0, %s5, %s3
  $region1: #{tpu_custom_call.1} parent=0
    #allocation2 [shape = 'u8[32768]{0}', space=vmem, size = 0x8000, scoped, tag = 'input window, operand 1']
    #allocation3 [shape = 's32[2]{0}', space=sflag, size = 0x8, scoped, tag = 'scoped memory for tpu_custom_call.1']
    #allocation4 [shape = 's32[2]{0}', space=sflag, size = 0x8, scoped, tag = 'scoped memory for tpu_custom_call.1']
    #allocation5 [shape = 'u8[32768]{0}', space=vmem, size = 0x8000, scoped, tag = 'output window, operand 0']
    %7 = vsyncpa [#allocation3], 0
    %s8 = scalar_lea.sflag [#allocation3], 1
    %9 = vsyncpa %s8, 0
    %10 = vsyncpa [#allocation4], 0
    %s11 = scalar_lea.sflag [#allocation4], 1
    %12 = vsyncpa %s11, 0
    loop: start=0, step=1, limit=6
    $region2: #{tpu_custom_call.1} parent=1 // loop_pre_header
      _
    $region3: #{tpu_custom_call.1} parent=1 // loop_header
      %s14 = sphi 0, %s18
      %p15 = scmp.ge.s32.totalorder %s14, 6
      %s21 = sphi 0, %s33
      %s22 = sphi 0, %s29
      %s23 = sphi 0, %s21
      %s24 = sphi 0, %s22
      %s25 = sphi 0, %s23
      %s26 = sphi 0, %s24
      %s34 = sphi 0, %s34
      %s36 = sphi 0, %s34
      %s37 = sphi 0, %s36
      %s51 = sphi 0, %s37
      %s59 = sphi 0, %s61
      %s62 = sphi 0, %s59
      %s63 = sphi 0, %s62
      %s79 = sphi 0, %s63
      %s87 = sphi 0, %s89
      %s90 = sphi 0, %s87
      %s91 = sphi 0, %s90
      %s107 = sphi 0, %s91
    $region4: #{tpu_custom_call.1} parent=1 // loop_header_branch
      %17 = sbr.rel (%p15) target = $region8
    $region5: #{tpu_custom_call.1} parent=1 // loop_body
      %s19 = ssub.s32 %s14, 1
      %s20 = ssub.s32 %s14, 2
      %s27 = sadd.s32 1, %s22
      %p28 = scmp.ge.s32.totalorder %s27, 2
      %s29 = scalar_select %p28, 0, %s27
      %s30 = sadd.s32 1, %s21
      %s31 = scalar_select %p28, %s30, %s21
      %p32 = scmp.ge.s32.totalorder %s31, 2
      %s33 = scalar_select %p32, 0, %s31
      %s35 = sadd.s32 %s34, 1
      %p38 = scmp.eq.s32.totalorder %s14, 3
      %p39 = scmp.ne.s32.totalorder %s34, %s36
      %p40 = scmp.eq.s32.totalorder %s14, 0
      %p41 = por %p39, %p40
      %p42 = scmp.ne.s32.totalorder %s34, %s36
      %p43 = scmp.eq.s32.totalorder %s19, 3
      %p44 = por %p42, %p43
      %p45 = scmp.ne.s32.totalorder %s36, %s37
      %p46 = scmp.eq.s32.totalorder %s19, 0
      %p47 = por %p45, %p46
      %p48 = scmp.ne.s32.totalorder %s36, %s37
      %p49 = scmp.eq.s32.totalorder %s20, 3
      %p50 = por %p48, %p49
      %p52 = scmp.ne.s32.totalorder %s37, %s51
      %p53 = scmp.eq.s32.totalorder %s20, 0
      %p54 = por %p52, %p53
      %s55 = ssub.s32 %s21, %s33
      %s56 = ssub.s32 %s22, %s29
      %s57 = sor.u32 %s55, %s56
      %p58 = scmp.eq.s32.totalorder %s57, 0
      %s60 = sadd.s32 %s59, 1
      %s61 = scalar_select %p58, %s59, %s60
      %p64 = pneg %p58
      %p65 = scmp.eq.s32.totalorder %s14, 3
      %p66 = por %p64, %p65
      %p67 = scmp.ne.s32.totalorder %s59, %s62
      %p68 = scmp.eq.s32.totalorder %s14, 0
      %p69 = por %p67, %p68
      %p70 = scmp.ne.s32.totalorder %s59, %s62
      %p71 = scmp.eq.s32.totalorder %s19, 3
      %p72 = por %p70, %p71
      %p73 = scmp.ne.s32.totalorder %s62, %s63
      %p74 = scmp.eq.s32.totalorder %s19, 0
      %p75 = por %p73, %p74
      %p76 = scmp.ne.s32.totalorder %s62, %s63
      %p77 = scmp.eq.s32.totalorder %s20, 3
      %p78 = por %p76, %p77
      %p80 = scmp.ne.s32.totalorder %s63, %s79
      %p81 = scmp.eq.s32.totalorder %s20, 0
      %p82 = por %p80, %p81
      %s83 = ssub.s32 %s21, %s33
      %s84 = ssub.s32 %s22, %s29
      %s85 = sor.u32 %s83, %s84
      %p86 = scmp.eq.s32.totalorder %s85, 0
      %s88 = sadd.s32 %s87, 1
      %s89 = scalar_select %p86, %s87, %s88
      %p92 = pneg %p86
      %p93 = scmp.eq.s32.totalorder %s14, 3
      %p94 = por %p92, %p93
      %p95 = scmp.ne.s32.totalorder %s87, %s90
      %p96 = scmp.eq.s32.totalorder %s14, 0
      %p97 = por %p95, %p96
      %p98 = scmp.ne.s32.totalorder %s87, %s90
      %p99 = scmp.eq.s32.totalorder %s19, 3
      %p100 = por %p98, %p99
      %p101 = scmp.ne.s32.totalorder %s90, %s91
      %p102 = scmp.eq.s32.totalorder %s19, 0
      %p103 = por %p101, %p102
      %p104 = scmp.ne.s32.totalorder %s90, %s91
      %p105 = scmp.eq.s32.totalorder %s20, 3
      %p106 = por %p104, %p105
      %p108 = scmp.ne.s32.totalorder %s91, %s107
      %p109 = scmp.eq.s32.totalorder %s20, 0
      %p110 = por %p108, %p109
      %p111 = scmp.le.s32.totalorder 1, %s14
      %p112 = scmp.lt.s32.totalorder %s14, 5
      %p113 = pnand %p111, %p112
      %p114 = pneg %p113
      // Predicated region
      $region9: #{tpu_custom_call.1} parent=5 // pred_check
        _
      $region10: #{tpu_custom_call.1} parent=5 // pred_check_branch
        %116 = sbr.rel (%p113) target = $region12
      $region11: #{tpu_custom_call.1} parent=5 // pred_region
        %s117 = ssub.s32 %s14, 1
        // Predicated region
        $region13: #{tpu_custom_call.1} parent=11 // pred_check
          %p118 = pneg %p47
        $region14: #{tpu_custom_call.1} parent=11 // pred_check_branch
          %120 = sbr.rel (%p118) target = $region16
        $region15: #{tpu_custom_call.1} parent=11 // pred_region
          _
        $region16: #{tpu_custom_call.1} parent=11 // pred_fallthru
          _
      $region12: #{tpu_custom_call.1} parent=5 // pred_fallthru
        _
      %p121 = scmp.lt.s32.totalorder %s14, 4
      // Predicated region
      $region17: #{tpu_custom_call.1} parent=5 // pred_check
        %p122 = pneg %p121
      $region18: #{tpu_custom_call.1} parent=5 // pred_check_branch
        %124 = sbr.rel (%p122) target = $region20
      $region19: #{tpu_custom_call.1} parent=5 // pred_region
        // Predicated region
        $region21: #{tpu_custom_call.1} parent=19 // pred_check
          %p125 = pneg %p69
        $region22: #{tpu_custom_call.1} parent=19 // pred_check_branch
          %127 = sbr.rel (%p125) target = $region24
        $region23: #{tpu_custom_call.1} parent=19 // pred_region
          %s128 = sand.u32 %s59, 1
          %s129 = scalar_lea.sflag [#allocation3], %s128
          %s130 = sand.u32 %s59, 1
          %s131 = smul.addr %s130, 32
          %s132 = scalar_lea.vmem [#allocation2], %s131
          %134 = vsyncadd %s129, 0
          %s135 = smul.addr %s22, 2
          %s136 = smul.addr %s21, 8
          %s137 = sadd.s32 %s135, %s136
          %s138 = smul.addr %s137, 8
          %s139 = scalar_lea.hbm %s1, %s138
          %s140 = sshll.u32 %s139, 4
          %s141 = int_to_ptr.hbm [resolvable:$true] %s140
          %s142 = sshll.u32 %s132, 4
          %s143 = int_to_ptr.vmem [resolvable:$true] %s142
          %148 = dma.hbm_to_vmem [thread:$0]  %s141, 512, %s143, %s129, 512, 256, 16
        $region24: #{tpu_custom_call.1} parent=19 // pred_fallthru
          _
      $region20: #{tpu_custom_call.1} parent=5 // pred_fallthru
        _
      %p149 = scmp.le.s32.totalorder 1, %s14
      %p150 = scmp.lt.s32.totalorder %s14, 5
      %p151 = pnand %p149, %p150
      %p152 = pneg %p151
      // Predicated region
      $region25: #{tpu_custom_call.1} parent=5 // pred_check
        _
      $region26: #{tpu_custom_call.1} parent=5 // pred_check_branch
        %154 = sbr.rel (%p151) target = $region28
      $region27: #{tpu_custom_call.1} parent=5 // pred_region
        %s155 = ssub.s32 %s14, 1
        %s156 = sand.u32 %s62, 1
        %s157 = scalar_lea.sflag [#allocation3], %s156
        %s158 = sand.u32 %s62, 1
        %s159 = smul.addr %s158, 32
        %s160 = scalar_lea.vmem [#allocation2], %s159
        // Predicated region
        $region29: #{tpu_custom_call.1} parent=27 // pred_check
          %p161 = pneg %p75
        $region30: #{tpu_custom_call.1} parent=27 // pred_check_branch
          %163 = sbr.rel (%p161) target = $region32
        $region31: #{tpu_custom_call.1} parent=27 // pred_region
          %165 = dma.done %s157, 512
        $region32: #{tpu_custom_call.1} parent=27 // pred_fallthru
          _
        %p166 = pneg %p47
        %p167 = pneg %p44
        %s168 = sand.u32 %s62, 1
        %s169 = scalar_lea.sflag [#allocation3], %s168
        %s170 = sand.u32 %s62, 1
        %s171 = smul.addr %s170, 32
        %s172 = scalar_lea.vmem [#allocation2], %s171
        %p173 = pneg %p75
        %p174 = pneg %p72
        %p175 = pneg %p103
        %p176 = pneg %p100
        %s177 = sand.u32 %s90, 1
        %s178 = scalar_lea.sflag [#allocation4], %s177
        %s179 = sand.u32 %s90, 1
        %s180 = smul.addr %s179, 32
        %s181 = scalar_lea.vmem [#allocation5], %s180
        %v182 = vld [vmem:[%s0] sm:$0xff]
        %v183 = vld [vmem:[%s160] sm:$0xff]
        %v184 = vld [vmem:[%s160 + $0x8] sm:$0xff]
        %v185 = vld [vmem:[%s160 + $0x10] sm:$0xff]
        %v186 = vld [vmem:[%s160 + $0x18] sm:$0xff]
        %v187 = vadd.f32 %v183, %v184
        %188 = vadd.xlane.f32.xlu0 %v187
        %v189 = vpop.xlane.xlu0 %188
        %v190 = vadd.f32 %v185, %v186
        %191 = vadd.xlane.f32.xlu0 %v190
        %v192 = vpop.xlane.xlu0 %191
        %v193 = vmul.f32 %v189, 0.00390625
        %v194 = vmul.f32 %v192, 0.00390625
        %v195 = vsub.f32 %v183, %v193
        %v196 = vsub.f32 %v184, %v193
        %v197 = vsub.f32 %v185, %v194
        %v198 = vsub.f32 %v186, %v194
        %v199 = vmul.f32 %v195, %v195
        %v200 = vmul.f32 %v196, %v196
        %v201 = vmul.f32 %v197, %v197
        %v202 = vmul.f32 %v198, %v198
        %v203 = vadd.f32 %v199, %v200
        %204 = vadd.xlane.f32.xlu0 %v203
        %v205 = vpop.xlane.xlu0 %204
        %v206 = vadd.f32 %v201, %v202
        %207 = vadd.xlane.f32.xlu0 %v206
        %v208 = vpop.xlane.xlu0 %207
        %v209 = vmul.f32 %v193, %v193
        %v210 = vmul.f32 %v194, %v194
        %v211 = vmul.f32 %v209, 0.0
        %v212 = vmul.f32 %v210, 0.0
        %v213 = vsub.f32 %v205, %v211
        %v214 = vsub.f32 %v208, %v212
        %v215 = vmul.f32 %v213, 0.00390625
        %v216 = vmul.f32 %v214, 0.00390625
        %v217 = vmax.f32 %v215, 0.0
        %v218 = vmax.f32 %v216, 0.0
        %v219 = vadd.f32 %v217, 1e-05
        %v220 = vadd.f32 %v218, 1e-05
        %v221 = vrsqrt.pop %v219
        %v222 = vmul.f32 %v221, %v219
        %v223 = vmul.f32 %v222, %v221
        %v224 = vmul.f32 0.5, %v223
        %v225 = vsub.f32 1.5, %v224
        %v226 = vmul.f32 %v221, %v225
        %vm227 = vweird.f32 %v219
        %vm228 = vweird.f32 %v221
        %vm229 = vmor %vm227, %vm228
        %v230 = vsel %vm229, %v221, %v226
        %v231 = vrsqrt.pop %v220
        %v232 = vmul.f32 %v231, %v220
        %v233 = vmul.f32 %v232, %v231
        %v234 = vmul.f32 0.5, %v233
        %v235 = vsub.f32 1.5, %v234
        %v236 = vmul.f32 %v231, %v235
        %vm237 = vweird.f32 %v220
        %vm238 = vweird.f32 %v231
        %vm239 = vmor %vm237, %vm238
        %v240 = vsel %vm239, %v231, %v236
        %v241 = vmul.f32 %v182, %v230
        %v242 = vmul.f32 %v182, %v240
        %244 = vset.pattern.permute.xlu0 0
        %245 = vperm.xlu0 %244, %v241
        %v246 = vpop.permute.xlu0 %245
        %249 = vset.pattern.permute.xlu0 0
        %250 = vperm.xlu0 %249, %v242
        %v251 = vpop.permute.xlu0 %250
        %v253 = vmul.f32 %v246, %v195
        %v254 = vmul.f32 %v246, %v196
        %v255 = vmul.f32 %v251, %v197
        %v256 = vmul.f32 %v251, %v198
        %v257 = vmul.f32 %v182, %v193
        %v258 = vmul.f32 %v182, %v194
        %260 = vset.pattern.permute.xlu0 1
        %261 = vperm.xlu0 %260, %v257
        %v262 = vpop.permute.xlu0 %261
        %265 = vset.pattern.permute.xlu0 1
        %266 = vperm.xlu0 %265, %v258
        %v267 = vpop.permute.xlu0 %266
        %v269 = vadd.f32 %v253, %v262
        %v270 = vadd.f32 %v254, %v262
        %v271 = vadd.f32 %v255, %v267
        %v272 = vadd.f32 %v256, %v267
        %274 = vset.pattern.permute.xlu0 2
        %275 = vperm.xlu0 %274, %v182
        %v276 = vpop.permute.xlu0 %275
        %v278 = vadd.f32 %v269, %v276
        %v279 = vadd.f32 %v270, %v276
        %v280 = vadd.f32 %v271, %v276
        %v281 = vadd.f32 %v272, %v276
        %v282 = vxor.u32 %v278, 2147483648
        %v283 = vxor.u32 %v279, 2147483648
        %v284 = vxor.u32 %v280, 2147483648
        %v285 = vxor.u32 %v281, 2147483648
        %v286 = vmul.f32 %v282, 1.442695
        %v287 = vpow.pop %v286
        %v288 = vmul.f32 %v283, 1.442695
        %v289 = vpow.pop %v288
        %v290 = vmul.f32 %v284, 1.442695
        %v291 = vpow.pop %v290
        %v292 = vmul.f32 %v285, 1.442695
        %v293 = vpow.pop %v292
        %v294 = vadd.f32 %v287, 1.0
        %v295 = vadd.f32 %v289, 1.0
        %v296 = vadd.f32 %v291, 1.0
        %v297 = vadd.f32 %v293, 1.0
        %v298 = vrcp.pop %v294
        %v299 = vmul.f32 %v294, %v298
        %v300 = vsub.f32 1.0, %v299
        %v301 = vmul.f32 %v298, %v300
        %v302 = vadd.f32 %v298, %v301
        %vm303 = vweird.f32 %v294
        %vm304 = vweird.f32 %v298
        %vm305 = vmor %vm303, %vm304
        %v306 = vsel %vm305, %v298, %v302
        %v307 = vand.u32 2147483647, %v294
        %vm308 = vcmp.eq.f32.partialorder %v307, 8.507059e+37
        %v309 = vand.u32 %v294, 2147483648
        %v310 = vor.u32 1.1754944e-38, %v309
        %v311 = vsel %vm308, %v310, %v306
        %v312 = vmul.f32 1.0, %v311
        %v313 = vrcp.pop %v295
        %v314 = vmul.f32 %v295, %v313
        %v315 = vsub.f32 1.0, %v314
        %v316 = vmul.f32 %v313, %v315
        %v317 = vadd.f32 %v313, %v316
        %vm318 = vweird.f32 %v295
        %vm319 = vweird.f32 %v313
        %vm320 = vmor %vm318, %vm319
        %v321 = vsel %vm320, %v313, %v317
        %v322 = vand.u32 2147483647, %v295
        %vm323 = vcmp.eq.f32.partialorder %v322, 8.507059e+37
        %v324 = vand.u32 %v295, 2147483648
        %v325 = vor.u32 1.1754944e-38, %v324
        %v326 = vsel %vm323, %v325, %v321
        %v327 = vmul.f32 1.0, %v326
        %v328 = vrcp.pop %v296
        %v329 = vmul.f32 %v296, %v328
        %v330 = vsub.f32 1.0, %v329
        %v331 = vmul.f32 %v328, %v330
        %v332 = vadd.f32 %v328, %v331
        %vm333 = vweird.f32 %v296
        %vm334 = vweird.f32 %v328
        %vm335 = vmor %vm333, %vm334
        %v336 = vsel %vm335, %v328, %v332
        %v337 = vand.u32 2147483647, %v296
        %vm338 = vcmp.eq.f32.partialorder %v337, 8.507059e+37
        %v339 = vand.u32 %v296, 2147483648
        %v340 = vor.u32 1.1754944e-38, %v339
        %v341 = vsel %vm338, %v340, %v336
        %v342 = vmul.f32 1.0, %v341
        %v343 = vrcp.pop %v297
        %v344 = vmul.f32 %v297, %v343
        %v345 = vsub.f32 1.0, %v344
        %v346 = vmul.f32 %v343, %v345
        %v347 = vadd.f32 %v343, %v346
        %vm348 = vweird.f32 %v297
        %vm349 = vweird.f32 %v343
        %vm350 = vmor %vm348, %vm349
        %v351 = vsel %vm350, %v343, %v347
        %v352 = vand.u32 2147483647, %v297
        %vm353 = vcmp.eq.f32.partialorder %v352, 8.507059e+37
        %v354 = vand.u32 %v297, 2147483648
        %v355 = vor.u32 1.1754944e-38, %v354
        %v356 = vsel %vm353, %v355, %v351
        %v357 = vmul.f32 1.0, %v356
        %v358 = vmul.f32 %v183, %v312
        %v359 = vmul.f32 %v184, %v327
        %v360 = vmul.f32 %v185, %v342
        %v361 = vmul.f32 %v186, %v357
        %362 = vst [vmem:[%s181] sm:$0xff] %v358
        %363 = vst [vmem:[%s181 + $0x8] sm:$0xff] %v359
        %364 = vst [vmem:[%s181 + $0x10] sm:$0xff] %v360
        %365 = vst [vmem:[%s181 + $0x18] sm:$0xff] %v361
        %s366 = sand.u32 %s90, 1
        %s367 = scalar_lea.sflag [#allocation4], %s366
        %s368 = sand.u32 %s90, 1
        %s369 = smul.addr %s368, 32
        %s370 = scalar_lea.vmem [#allocation5], %s369
        // Predicated region
        $region33: #{tpu_custom_call.1} parent=27 // pred_check
          %p371 = pneg %p100
        $region34: #{tpu_custom_call.1} parent=27 // pred_check_branch
          %373 = sbr.rel (%p371) target = $region36
        $region35: #{tpu_custom_call.1} parent=27 // pred_region
          %375 = vsyncadd %s367, 0
          %s376 = smul.addr %s24, 4
          %s377 = smul.addr %s23, 8
          %s378 = sadd.s32 %s376, %s377
          %s379 = smul.addr %s378, 8
          %s380 = scalar_lea.hbm %s2, %s379
          %s382 = sshll.u32 %s370, 4
          %s383 = int_to_ptr.vmem [resolvable:$true] %s382
          %s384 = sshll.u32 %s380, 4
          %s385 = int_to_ptr.hbm [resolvable:$true] %s384
          %387 = dma.vmem_to_hbm [thread:$0]  %s383, 512, %s385, %s367
        $region36: #{tpu_custom_call.1} parent=27 // pred_fallthru
          _
      $region28: #{tpu_custom_call.1} parent=5 // pred_fallthru
        _
      %p388 = scmp.le.s32.totalorder 2, %s14
      // Predicated region
      $region37: #{tpu_custom_call.1} parent=5 // pred_check
        %p389 = pneg %p388
      $region38: #{tpu_custom_call.1} parent=5 // pred_check_branch
        %391 = sbr.rel (%p389) target = $region40
      $region39: #{tpu_custom_call.1} parent=5 // pred_region
        %s392 = ssub.s32 %s14, 2
        // Predicated region
        $region41: #{tpu_custom_call.1} parent=39 // pred_check
          %p393 = pneg %p106
        $region42: #{tpu_custom_call.1} parent=39 // pred_check_branch
          %395 = sbr.rel (%p393) target = $region44
        $region43: #{tpu_custom_call.1} parent=39 // pred_region
          %s396 = sand.u32 %s91, 1
          %s397 = scalar_lea.sflag [#allocation4], %s396
          %s398 = sand.u32 %s91, 1
          %s399 = smul.addr %s398, 32
          %s400 = scalar_lea.vmem [#allocation5], %s399
          %402 = dma.done %s397, 512
        $region44: #{tpu_custom_call.1} parent=39 // pred_fallthru
          _
      $region40: #{tpu_custom_call.1} parent=5 // pred_fallthru
        _
    $region6: #{tpu_custom_call.1} parent=1 // loop_footer
      %s18 = sadd.s32 1, %s14
    $region7: #{tpu_custom_call.1} parent=1 // loop_footer_branch
      %13 = sbr.rel target = $region3
    $region8: #{tpu_custom_call.1} parent=1 // loop_exit
      _
    %403 = vsyncpa [#allocation3], 1
    %s404 = scalar_lea.sflag [#allocation3], 1
    %405 = vsyncpa %s404, 1
    %406 = vsyncpa [#allocation4], 1
    %s407 = scalar_lea.sflag [#allocation4], 1
    %408 = vsyncpa %s407, 1

</llo_original>
